<compile_context>
chip_gen: v6e
topology: v6e:2x2x1
jax: 0.10.0
libtpu: 0.0.40
codegen_flags: <defaults>
</compile_context>

<pallas_src>
import functools

import jax
import jax.numpy as jnp
from jax.experimental import pallas as pl
from jax.experimental.pallas import tpu as pltpu


def _cdiv(a, b):
    return (a + b - 1) // b


def _round_up(x, m):
    return ((x + m - 1) // m) * m


def _gaussian_smearing_kernel(coeff_ref, dist_ref, offset_ref, out_ref):
    """One (TM, R) output tile of exp(coeff * (dist - offset)^2).

    coeff_ref  : (1, 1)  f32 in SMEM (scalar parameter)
    dist_ref   : (TM, 1) f32 row block of distances
    offset_ref : (1, R)  f32 RBF centers (R = num_rbf, unpadded)
    out_ref    : (TM, R) f32 smeared output tile
    """
    coeff = coeff_ref[0, 0]
    diff = dist_ref[...] - offset_ref[...]        # (TM,1)-(1,R) -> (TM,R) on VPU
    out_ref[...] = jnp.exp(coeff * diff * diff)   # exp goes to the EUP


@functools.partial(jax.jit,
                   static_argnames=("block_rows", "min_pallas_elements"))
def gaussian_smearing(dist, offset, coeff, *, block_rows=2048,
                      min_pallas_elements=1 << 20):
    """JAX/Pallas equivalent of GaussianSmearing.forward(dist).

    dist   : (...,) float32 edge distances (any shape, flattened internally)
    offset : (num_rbf,) float32 RBF centers (the module's `offset` parameter)
    coeff  : scalar float32 (the module's `coeff` parameter)
    returns: dist.shape + (num_rbf,) float32
    """
    dist = jnp.asarray(dist, jnp.float32)
    offset = jnp.asarray(offset, jnp.float32).reshape(-1)
    coeff = jnp.asarray(coeff, jnp.float32)

    orig_shape = dist.shape
    flat = dist.reshape(-1)
    e = flat.shape[0]
    num_rbf = offset.shape[0]

    # Tiny problems (or empty input): fixed pallas_call / grid overhead
    # dominates and the custom call is a fusion barrier for XLA.
    if e == 0 or e * num_rbf < min_pallas_elements:
        out = jnp.exp(coeff * (flat[:, None] - offset[None, :]) ** 2)
        return out.reshape(*orig_shape, num_rbf)

    # Row tile: multiple of 8 (sublane), capped so the grid has >= 2 steps
    # whenever E allows it (lets "parallel" shard rows across v7x's two TCs).
    tm = min(block_rows, _round_up(_cdiv(e, 2), 8))
    tm = max(_round_up(tm, 8), 8)
    grid = _cdiv(e, tm)

    dist_2d = flat.reshape(e, 1)                 # cheap; no zero-pad copy
    offset_2d = offset.reshape(1, num_rbf)       # resident, loaded once
    coeff_2d = coeff.reshape(1, 1)

    out = pl.pallas_call(
        _gaussian_smearing_kernel,
        out_shape=jax.ShapeDtypeStruct((e, num_rbf), jnp.float32),
        grid=(grid,),
        in_specs=[
            pl.BlockSpec(memory_space=pltpu.MemorySpace.SMEM),   # coeff scalar
            pl.BlockSpec((tm, 1), lambda i: (i, 0)),             # dist rows
            pl.BlockSpec((1, num_rbf), lambda i: (0, 0)),        # offsets
        ],
        out_specs=pl.BlockSpec((tm, num_rbf), lambda i: (i, 0)),
        compiler_params=pltpu.CompilerParams(
            dimension_semantics=("parallel",)),
    )(coeff_2d, dist_2d, offset_2d)

    return out.reshape(*orig_shape, num_rbf)


def make_gaussian_smearing_params(cutoff_lower=0.0, cutoff_upper=5.0,
                                  num_rbf=50):
    """Equivalent of GaussianSmearing._initial_params()."""
    offset = jnp.linspace(cutoff_lower, cutoff_upper, num_rbf,
                          dtype=jnp.float32)
    coeff = -0.5 / (offset[1] - offset[0]) ** 2
    return offset, coeff
# TODO(synk): parameter registration / reset_parameters are nn.Module state
# with no kernel equivalent; `offset`/`coeff` are simply passed in as arrays.


if __name__ == "__main__":
    key = jax.random.PRNGKey(0)

    # Small, module-consistent shapes: E=500 edge distances, 50 RBFs.
    num_edges = 500
    cutoff_lower, cutoff_upper, num_rbf = 0.0, 5.0, 50

    dist = jax.random.uniform(key, (num_edges,), jnp.float32,
                              minval=cutoff_lower, maxval=cutoff_upper)
    offset, coeff = make_gaussian_smearing_params(
        cutoff_lower, cutoff_upper, num_rbf)

    # Force the Pallas path at this small demo size (min_pallas_elements=0);
    # E=500 with tm=256 also exercises the ragged final row block.
    out = gaussian_smearing(dist, offset, coeff, min_pallas_elements=0)
    out = jax.block_until_ready(out)

    # Reference check (pure JAX, same math as the PyTorch module).
    ref = jnp.exp(coeff * (dist[:, None] - offset[None, :]) ** 2)
    assert out.shape == (num_edges, num_rbf)
    assert jnp.allclose(out, ref, atol=1e-5, rtol=1e-5)

    # Also sanity-check the small-problem jnp fallback path.
    out_small = jax.block_until_ready(gaussian_smearing(dist, offset, coeff))
    assert jnp.allclose(out_small, ref, atol=1e-5, rtol=1e-5)

    print("KERNEL_OK")
</pallas_src>

<mosaic_0001>
module attributes {stable_mosaic.version = 11 : i64} {
  func.func @_gaussian_smearing_kernel(%arg0: i32, %arg1: memref<1x1xf32, #tpu.memory_space<smem>>, %arg2: memref<256x1xf32, #tpu.memory_space<vmem>>, %arg3: memref<1x50xf32, #tpu.memory_space<vmem>>, %arg4: memref<256x50xf32, #tpu.memory_space<vmem>>) attributes {dimension_semantics = [#tpu.dimension_semantics<parallel>], iteration_bounds = array<i64: 2>, scalar_prefetch = 0 : i64, scratch_operands = 0 : i64, tpu.core_type = #tpu.core_type<tc>, window_params = [{transform_indices = @transform_0, window_bounds = array<i64: 1, 1>}, {transform_indices = @transform_1, window_bounds = array<i64: 256, 1>}, {pipeline_mode = #tpu.pipeline_mode<synchronous>, transform_indices = @transform_2, window_bounds = array<i64: 1, 50>}, {transform_indices = @transform_3, window_bounds = array<i64: 256, 50>}]} {
    %c0 = arith.constant 0 : index
    %c0_0 = arith.constant 0 : index
    %0 = memref.load %arg1[%c0, %c0_0] : memref<1x1xf32, #tpu.memory_space<smem>>
    %c0_1 = arith.constant 0 : index
    %c0_2 = arith.constant 0 : index
    %1 = vector.load %arg2[%c0_1, %c0_2] : memref<256x1xf32, #tpu.memory_space<vmem>>, vector<256x1xf32>
    %c0_3 = arith.constant 0 : index
    %c0_4 = arith.constant 0 : index
    %2 = vector.load %arg3[%c0_3, %c0_4] : memref<1x50xf32, #tpu.memory_space<vmem>>, vector<1x50xf32>
    %3 = vector.broadcast %1 : vector<256x1xf32> to vector<256x50xf32>
    %4 = vector.broadcast %2 : vector<1x50xf32> to vector<256x50xf32>
    %5 = arith.subf %3, %4 : vector<256x50xf32>
    %6 = vector.broadcast %0 : f32 to vector<256x50xf32>
    %7 = arith.mulf %6, %5 : vector<256x50xf32>
    %8 = arith.mulf %7, %5 : vector<256x50xf32>
    %9 = math.exp %8 : vector<256x50xf32>
    %c0_5 = arith.constant 0 : index
    %c0_6 = arith.constant 0 : index
    %10 = vector.load %arg4[%c0_5, %c0_6] : memref<256x50xf32, #tpu.memory_space<vmem>>, vector<256x50xf32>
    tpu.vector_store %arg4[%c0_5, %c0_6], %9 {strides = array<i32>} : memref<256x50xf32, #tpu.memory_space<vmem>>, vector<256x50xf32>,
    return
  }
  func.func @transform_0(%arg0: i32) -> (i32, i32) {
    %c0_i32 = arith.constant 0 : i32
    %c0_i32_0 = arith.constant 0 : i32
    %c0_i32_1 = arith.constant 0 : i32
    return %c0_i32, %c0_i32_0 : i32, i32
  }
  func.func @transform_1(%arg0: i32) -> (i32, i32) {
    %c0_i32 = arith.constant 0 : i32
    %c0_i32_0 = arith.constant 0 : i32
    return %arg0, %c0_i32 : i32, i32
  }
  func.func @transform_2(%arg0: i32) -> (i32, i32) {
    %c0_i32 = arith.constant 0 : i32
    %c0_i32_0 = arith.constant 0 : i32
    %c0_i32_1 = arith.constant 0 : i32
    return %c0_i32, %c0_i32_0 : i32, i32
  }
  func.func @transform_3(%arg0: i32) -> (i32, i32) {
    %c0_i32 = arith.constant 0 : i32
    %c0_i32_0 = arith.constant 0 : i32
    return %arg0, %c0_i32 : i32, i32
  }
}

</mosaic_0001>

<llo_original>
// kernel: gaussian_smearing.1
$region0: #{gaussian_smearing.1}
  #allocation0 [shape = 'u32[]', space=smem, size = 0x4, offset = 0x4, fixed_abs, tag = 'smem constant byte address 0x4 - core index']
  #allocation1 [shape = 'u32[144,128]{1,0:T(1,128)}', space=vmem, size = 0x12000, scoped, tag = 'internal scratch']
  #allocation2 [shape = 'f32[1,1]{1,0:T(1,128)S(6)}', space=smem, size = 0x200, scoped, tag = 'scoped memory for gaussian_smearing.1']
  %s0 = inlined_call_operand.<no memory space> [shape: f32[1,1], index: 0, kind: input, shape index: {}]
  %s1 = inlined_call_operand.vmem [shape: f32[500,1], index: 1, kind: input, shape index: {}]
  %s2 = inlined_call_operand.vmem [shape: f32[1,50], index: 2, kind: input, shape index: {}]
  %s3 = inlined_call_operand.vmem [shape: f32[500,50], index: 3, kind: output, shape index: {}]
  %s4 = sld [smem:[#allocation0]]
  $region93: #{gaussian_smearing.1} parent=0
    _
  %s6 = ssub.s32 1, %s4
  %s7 = scalar_select 0, %s6, %s4
  %8 = sst [smem:[#allocation2]] %s0
  $region1: #{gaussian_smearing.1} parent=0
    #allocation3 [shape = 'u8[262144]{0}', space=vmem, size = 0x40000, scoped, tag = 'output window, operand 0']
    loop: start=0, step=1, limit=4
    $region2: #{gaussian_smearing.1} parent=1 // loop_pre_header
      _
    $region3: #{gaussian_smearing.1} parent=1 // loop_header
      %s10 = sphi 0, %s14
      %p11 = scmp.ge.s32.totalorder %s10, 4
      %s18 = sphi 0, %s18
      %s20 = sphi 0, %s18
      %s21 = sphi 0, %s20
      %s35 = sphi 0, %s21
      %s41 = sphi 0, %s43
      %s44 = sphi 0, %s41
      %s45 = sphi 0, %s44
      %s61 = sphi 0, %s45
      %s65 = sphi 0, %s65
      %s67 = sphi 0, %s65
      %s68 = sphi 0, %s67
      %s82 = sphi 0, %s68
      %s88 = sphi 0, %s90
      %s91 = sphi 0, %s88
      %s92 = sphi 0, %s91
      %s108 = sphi 0, %s92
    $region4: #{gaussian_smearing.1} parent=1 // loop_header_branch
      %13 = sbr.rel (%p11) target = $region8
    $region5: #{gaussian_smearing.1} parent=1 // loop_body
      %s15 = ssub.s32 %s10, 1
      %s16 = ssub.s32 %s10, 2
      %s17 = sadd.s32 %s10, 1
      %s19 = sadd.s32 %s18, 1
      %p22 = scmp.eq.s32.totalorder %s10, 1
      %p23 = scmp.ne.s32.totalorder %s18, %s20
      %p24 = scmp.eq.s32.totalorder %s10, 0
      %p25 = por %p23, %p24
      %p26 = scmp.ne.s32.totalorder %s18, %s20
      %p27 = scmp.eq.s32.totalorder %s15, 1
      %p28 = por %p26, %p27
      %p29 = scmp.ne.s32.totalorder %s20, %s21
      %p30 = scmp.eq.s32.totalorder %s15, 0
      %p31 = por %p29, %p30
      %p32 = scmp.ne.s32.totalorder %s20, %s21
      %p33 = scmp.eq.s32.totalorder %s16, 1
      %p34 = por %p32, %p33
      %p36 = scmp.ne.s32.totalorder %s21, %s35
      %p37 = scmp.eq.s32.totalorder %s16, 0
      %p38 = por %p36, %p37
      %s39 = ssub.s32 %s10, %s17
      %p40 = scmp.eq.s32.totalorder %s39, 0
      %s42 = sadd.s32 %s41, 1
      %s43 = scalar_select %p40, %s41, %s42
      %p46 = pneg %p40
      %p47 = scmp.eq.s32.totalorder %s10, 1
      %p48 = por %p46, %p47
      %p49 = scmp.ne.s32.totalorder %s41, %s44
      %p50 = scmp.eq.s32.totalorder %s10, 0
      %p51 = por %p49, %p50
      %p52 = scmp.ne.s32.totalorder %s41, %s44
      %p53 = scmp.eq.s32.totalorder %s15, 1
      %p54 = por %p52, %p53
      %p55 = scmp.ne.s32.totalorder %s44, %s45
      %p56 = scmp.eq.s32.totalorder %s15, 0
      %p57 = por %p55, %p56
      %p58 = scmp.ne.s32.totalorder %s44, %s45
      %p59 = scmp.eq.s32.totalorder %s16, 1
      %p60 = por %p58, %p59
      %p62 = scmp.ne.s32.totalorder %s45, %s61
      %p63 = scmp.eq.s32.totalorder %s16, 0
      %p64 = por %p62, %p63
      %s66 = sadd.s32 %s65, 1
      %p69 = scmp.eq.s32.totalorder %s10, 1
      %p70 = scmp.ne.s32.totalorder %s65, %s67
      %p71 = scmp.eq.s32.totalorder %s10, 0
      %p72 = por %p70, %p71
      %p73 = scmp.ne.s32.totalorder %s65, %s67
      %p74 = scmp.eq.s32.totalorder %s15, 1
      %p75 = por %p73, %p74
      %p76 = scmp.ne.s32.totalorder %s67, %s68
      %p77 = scmp.eq.s32.totalorder %s15, 0
      %p78 = por %p76, %p77
      %p79 = scmp.ne.s32.totalorder %s67, %s68
      %p80 = scmp.eq.s32.totalorder %s16, 1
      %p81 = por %p79, %p80
      %p83 = scmp.ne.s32.totalorder %s68, %s82
      %p84 = scmp.eq.s32.totalorder %s16, 0
      %p85 = por %p83, %p84
      %s86 = ssub.s32 %s10, %s17
      %p87 = scmp.eq.s32.totalorder %s86, 0
      %s89 = sadd.s32 %s88, 1
      %s90 = scalar_select %p87, %s88, %s89
      %p93 = pneg %p87
      %p94 = scmp.eq.s32.totalorder %s10, 1
      %p95 = por %p93, %p94
      %p96 = scmp.ne.s32.totalorder %s88, %s91
      %p97 = scmp.eq.s32.totalorder %s10, 0
      %p98 = por %p96, %p97
      %p99 = scmp.ne.s32.totalorder %s88, %s91
      %p100 = scmp.eq.s32.totalorder %s15, 1
      %p101 = por %p99, %p100
      %p102 = scmp.ne.s32.totalorder %s91, %s92
      %p103 = scmp.eq.s32.totalorder %s15, 0
      %p104 = por %p102, %p103
      %p105 = scmp.ne.s32.totalorder %s91, %s92
      %p106 = scmp.eq.s32.totalorder %s16, 1
      %p107 = por %p105, %p106
      %p109 = scmp.ne.s32.totalorder %s92, %s108
      %p110 = scmp.eq.s32.totalorder %s16, 0
      %p111 = por %p109, %p110
      %p112 = scmp.le.s32.totalorder 1, %s10
      %p113 = scmp.lt.s32.totalorder %s10, 3
      %p114 = pnand %p112, %p113
      %p115 = pneg %p114
      // Predicated region
      $region9: #{gaussian_smearing.1} parent=5 // pred_check
        _
      $region10: #{gaussian_smearing.1} parent=5 // pred_check_branch
        %117 = sbr.rel (%p114) target = $region12
      $region11: #{gaussian_smearing.1} parent=5 // pred_region
        %s118 = ssub.s32 %s10, 1
        // Predicated region
        $region13: #{gaussian_smearing.1} parent=11 // pred_check
          %p119 = pneg %p31
        $region14: #{gaussian_smearing.1} parent=11 // pred_check_branch
          %121 = sbr.rel (%p119) target = $region16
        $region15: #{gaussian_smearing.1} parent=11 // pred_region
          _
        $region16: #{gaussian_smearing.1} parent=11 // pred_fallthru
          _
        // Predicated region
        $region17: #{gaussian_smearing.1} parent=11 // pred_check
          %p122 = pneg %p78
        $region18: #{gaussian_smearing.1} parent=11 // pred_check_branch
          %124 = sbr.rel (%p122) target = $region20
        $region19: #{gaussian_smearing.1} parent=11 // pred_region
          _
        $region20: #{gaussian_smearing.1} parent=11 // pred_fallthru
          _
      $region12: #{gaussian_smearing.1} parent=5 // pred_fallthru
        _
      %p125 = scmp.lt.s32.totalorder %s10, 2
      // Predicated region
      $region21: #{gaussian_smearing.1} parent=5 // pred_check
        %p126 = pneg %p125
      $region22: #{gaussian_smearing.1} parent=5 // pred_check_branch
        %128 = sbr.rel (%p126) target = $region24
      $region23: #{gaussian_smearing.1} parent=5 // pred_region
        // Predicated region
        $region25: #{gaussian_smearing.1} parent=23 // pred_check
          %p129 = pneg %p51
        $region26: #{gaussian_smearing.1} parent=23 // pred_check_branch
          %131 = sbr.rel (%p129) target = $region28
        $region27: #{gaussian_smearing.1} parent=23 // pred_region
          %s132 = smul.u32 32, %s10
          %s133 = ssub.s32 63, %s132
          %p134 = scmp.lt.s32.totalorder %s133, 32
          %s135 = scalar_select %p134, %s133, 32
          %s136 = smul.u32 128, %s135
          %p137 = scmp.lt.s32.totalorder %s132, 62
          %s138 = scalar_select %p137, %s132, 62
          %s139 = smul.addr %s138, 8
          %s140 = scalar_lea.vmem %s1, %s139
          %s141 = smul.u32 32, %s10
          %s142 = ssub.s32 63, %s141
          %p143 = scmp.lt.s32.totalorder %s142, 32
          %s144 = scalar_select %p143, %s142, 32
          %s145 = smul.u32 128, %s144
        $region28: #{gaussian_smearing.1} parent=23 // pred_fallthru
          _
      $region24: #{gaussian_smearing.1} parent=5 // pred_fallthru
        _
      %p146 = scmp.le.s32.totalorder 1, %s10
      %p147 = scmp.lt.s32.totalorder %s10, 3
      %p148 = pnand %p146, %p147
      %p149 = pneg %p148
      // Predicated region
      $region29: #{gaussian_smearing.1} parent=5 // pred_check
        _
      $region30: #{gaussian_smearing.1} parent=5 // pred_check_branch
        %151 = sbr.rel (%p148) target = $region32
      $region31: #{gaussian_smearing.1} parent=5 // pred_region
        %s152 = ssub.s32 %s10, 1
        %p153 = pneg %p31
        %p154 = pneg %p28
        %s155 = smul.u32 32, %s15
        %s156 = ssub.s32 63, %s155
        %p157 = scmp.lt.s32.totalorder %s156, 32
        %s158 = scalar_select %p157, %s156, 32
        %s159 = smul.u32 128, %s158
        %p160 = scmp.lt.s32.totalorder %s155, 62
        %s161 = scalar_select %p160, %s155, 62
        %s162 = smul.addr %s161, 8
        %s163 = scalar_lea.vmem %s1, %s162
        %p164 = pneg %p57
        %p165 = pneg %p54
        %p166 = pneg %p78
        %p167 = pneg %p75
        %p168 = pneg %p104
        %p169 = pneg %p101
        %s170 = sand.u32 %s91, 1
        %s171 = sand.u32 %s91, 1
        %s172 = smul.addr %s171, 256
        %s173 = scalar_lea.vmem [#allocation3], %s172
        %s174 = smul.u32 32, %s15
        %s175 = ssub.s32 63, %s174
        %p176 = scmp.lt.s32.totalorder %s175, 32
        %s177 = scalar_select %p176, %s175, 32
        %s178 = smul.u32 128, %s177
        %p179 = scmp.lt.s32.totalorder %s174, 62
        %s180 = scalar_select %p179, %s174, 62
        %s181 = smul.addr %s180, 8
        %s182 = scalar_lea.vmem %s1, %s181
        %s183 = smul.u32 32, %s15
        %s184 = ssub.s32 63, %s183
        %p185 = scmp.lt.s32.totalorder %s184, 32
        %s186 = scalar_select %p185, %s184, 32
        %s187 = smul.u32 128, %s186
        %s188 = smul.u32 32, %s15
        %s189 = ssub.s32 63, %s188
        %p190 = scmp.lt.s32.totalorder %s189, 32
        %s191 = scalar_select %p190, %s189, 32
        %s192 = smul.u32 128, %s191
        %s193 = sld [smem:[#allocation2]]
        %v194 = vld [vmem:[%s182] sm:$0xff]
        %v195 = vld [vmem:[%s182 + $0x8] sm:$0xff]
        %v196 = vld [vmem:[%s182 + $0x10] sm:$0xff]
        %v197 = vld [vmem:[%s182 + $0x18] sm:$0xff]
        %v198 = vld [vmem:[%s182 + $0x20] sm:$0xff]
        %v199 = vld [vmem:[%s182 + $0x28] sm:$0xff]
        %v200 = vld [vmem:[%s182 + $0x30] sm:$0xff]
        %v201 = vld [vmem:[%s182 + $0x38] sm:$0xff]
        %v202 = vld [vmem:[%s182 + $0x40] sm:$0xff]
        %v203 = vld [vmem:[%s182 + $0x48] sm:$0xff]
        %v204 = vld [vmem:[%s182 + $0x50] sm:$0xff]
        %v205 = vld [vmem:[%s182 + $0x58] sm:$0xff]
        %v206 = vld [vmem:[%s182 + $0x60] sm:$0xff]
        %v207 = vld [vmem:[%s182 + $0x68] sm:$0xff]
        %v208 = vld [vmem:[%s182 + $0x70] sm:$0xff]
        %v209 = vld [vmem:[%s182 + $0x78] sm:$0xff]
        %v210 = vld [vmem:[%s182 + $0x80] sm:$0xff]
        %v211 = vld [vmem:[%s182 + $0x88] sm:$0xff]
        %v212 = vld [vmem:[%s182 + $0x90] sm:$0xff]
        %v213 = vld [vmem:[%s182 + $0x98] sm:$0xff]
        %v214 = vld [vmem:[%s182 + $0xa0] sm:$0xff]
        %v215 = vld [vmem:[%s182 + $0xa8] sm:$0xff]
        %v216 = vld [vmem:[%s182 + $0xb0] sm:$0xff]
        %v217 = vld [vmem:[%s182 + $0xb8] sm:$0xff]
        %v218 = vld [vmem:[%s182 + $0xc0] sm:$0xff]
        %v219 = vld [vmem:[%s182 + $0xc8] sm:$0xff]
        %v220 = vld [vmem:[%s182 + $0xd0] sm:$0xff]
        %v221 = vld [vmem:[%s182 + $0xd8] sm:$0xff]
        %v222 = vld [vmem:[%s182 + $0xe0] sm:$0xff]
        %v223 = vld [vmem:[%s182 + $0xe8] sm:$0xff]
        %v224 = vld [vmem:[%s182 + $0xf0] sm:$0xff]
        %v225 = vld [vmem:[%s182 + $0xf8] sm:$0xff]
        %v226 = vld [vmem:[%s2] sm:$0x1]
        %228 = vset.pattern.permute.xlu0 0
        %229 = vperm.xlu0 %228, %v194
        %v230 = vpop.permute.xlu0 %229
        %233 = vset.pattern.permute.xlu0 0
        %234 = vperm.xlu0 %233, %v195
        %v235 = vpop.permute.xlu0 %234
        %238 = vset.pattern.permute.xlu0 0
        %239 = vperm.xlu0 %238, %v196
        %v240 = vpop.permute.xlu0 %239
        %243 = vset.pattern.permute.xlu0 0
        %244 = vperm.xlu0 %243, %v197
        %v245 = vpop.permute.xlu0 %244
        %248 = vset.pattern.permute.xlu0 0
        %249 = vperm.xlu0 %248, %v198
        %v250 = vpop.permute.xlu0 %249
        %253 = vset.pattern.permute.xlu0 0
        %254 = vperm.xlu0 %253, %v199
        %v255 = vpop.permute.xlu0 %254
        %258 = vset.pattern.permute.xlu0 0
        %259 = vperm.xlu0 %258, %v200
        %v260 = vpop.permute.xlu0 %259
        %263 = vset.pattern.permute.xlu0 0
        %264 = vperm.xlu0 %263, %v201
        %v265 = vpop.permute.xlu0 %264
        %268 = vset.pattern.permute.xlu0 0
        %269 = vperm.xlu0 %268, %v202
        %v270 = vpop.permute.xlu0 %269
        %273 = vset.pattern.permute.xlu0 0
        %274 = vperm.xlu0 %273, %v203
        %v275 = vpop.permute.xlu0 %274
        %278 = vset.pattern.permute.xlu0 0
        %279 = vperm.xlu0 %278, %v204
        %v280 = vpop.permute.xlu0 %279
        %283 = vset.pattern.permute.xlu0 0
        %284 = vperm.xlu0 %283, %v205
        %v285 = vpop.permute.xlu0 %284
        %288 = vset.pattern.permute.xlu0 0
        %289 = vperm.xlu0 %288, %v206
        %v290 = vpop.permute.xlu0 %289
        %293 = vset.pattern.permute.xlu0 0
        %294 = vperm.xlu0 %293, %v207
        %v295 = vpop.permute.xlu0 %294
        %298 = vset.pattern.permute.xlu0 0
        %299 = vperm.xlu0 %298, %v208
        %v300 = vpop.permute.xlu0 %299
        %303 = vset.pattern.permute.xlu0 0
        %304 = vperm.xlu0 %303, %v209
        %v305 = vpop.permute.xlu0 %304
        %308 = vset.pattern.permute.xlu0 0
        %309 = vperm.xlu0 %308, %v210
        %v310 = vpop.permute.xlu0 %309
        %313 = vset.pattern.permute.xlu0 0
        %314 = vperm.xlu0 %313, %v211
        %v315 = vpop.permute.xlu0 %314
        %318 = vset.pattern.permute.xlu0 0
        %319 = vperm.xlu0 %318, %v212
        %v320 = vpop.permute.xlu0 %319
        %323 = vset.pattern.permute.xlu0 0
        %324 = vperm.xlu0 %323, %v213
        %v325 = vpop.permute.xlu0 %324
        %328 = vset.pattern.permute.xlu0 0
        %329 = vperm.xlu0 %328, %v214
        %v330 = vpop.permute.xlu0 %329
        %333 = vset.pattern.permute.xlu0 0
        %334 = vperm.xlu0 %333, %v215
        %v335 = vpop.permute.xlu0 %334
        %338 = vset.pattern.permute.xlu0 0
        %339 = vperm.xlu0 %338, %v216
        %v340 = vpop.permute.xlu0 %339
        %343 = vset.pattern.permute.xlu0 0
        %344 = vperm.xlu0 %343, %v217
        %v345 = vpop.permute.xlu0 %344
        %348 = vset.pattern.permute.xlu0 0
        %349 = vperm.xlu0 %348, %v218
        %v350 = vpop.permute.xlu0 %349
        %353 = vset.pattern.permute.xlu0 0
        %354 = vperm.xlu0 %353, %v219
        %v355 = vpop.permute.xlu0 %354
        %358 = vset.pattern.permute.xlu0 0
        %359 = vperm.xlu0 %358, %v220
        %v360 = vpop.permute.xlu0 %359
        %363 = vset.pattern.permute.xlu0 0
        %364 = vperm.xlu0 %363, %v221
        %v365 = vpop.permute.xlu0 %364
        %368 = vset.pattern.permute.xlu0 0
        %369 = vperm.xlu0 %368, %v222
        %v370 = vpop.permute.xlu0 %369
        %373 = vset.pattern.permute.xlu0 0
        %374 = vperm.xlu0 %373, %v223
        %v375 = vpop.permute.xlu0 %374
        %378 = vset.pattern.permute.xlu0 0
        %379 = vperm.xlu0 %378, %v224
        %v380 = vpop.permute.xlu0 %379
        %383 = vset.pattern.permute.xlu0 0
        %384 = vperm.xlu0 %383, %v225
        %v385 = vpop.permute.xlu0 %384
        %v388 = vlaneseq
        %v389 = vshrl.u32 %v388, 7
        %v390 = vsub.s32 0, %v389
        %v391 = vrot.slane %v226, %v390
        %v393 = vsub.f32 %v230, %v391
        %v394 = vsub.f32 %v235, %v391
        %v395 = vsub.f32 %v240, %v391
        %v396 = vsub.f32 %v245, %v391
        %v397 = vsub.f32 %v250, %v391
        %v398 = vsub.f32 %v255, %v391
        %v399 = vsub.f32 %v260, %v391
        %v400 = vsub.f32 %v265, %v391
        %v401 = vsub.f32 %v270, %v391
        %v402 = vsub.f32 %v275, %v391
        %v403 = vsub.f32 %v280, %v391
        %v404 = vsub.f32 %v285, %v391
        %v405 = vsub.f32 %v290, %v391
        %v406 = vsub.f32 %v295, %v391
        %v407 = vsub.f32 %v300, %v391
        %v408 = vsub.f32 %v305, %v391
        %v409 = vsub.f32 %v310, %v391
        %v410 = vsub.f32 %v315, %v391
        %v411 = vsub.f32 %v320, %v391
        %v412 = vsub.f32 %v325, %v391
        %v413 = vsub.f32 %v330, %v391
        %v414 = vsub.f32 %v335, %v391
        %v415 = vsub.f32 %v340, %v391
        %v416 = vsub.f32 %v345, %v391
        %v417 = vsub.f32 %v350, %v391
        %v418 = vsub.f32 %v355, %v391
        %v419 = vsub.f32 %v360, %v391
        %v420 = vsub.f32 %v365, %v391
        %v421 = vsub.f32 %v370, %v391
        %v422 = vsub.f32 %v375, %v391
        %v423 = vsub.f32 %v380, %v391
        %v424 = vsub.f32 %v385, %v391
        %v425 = vstv %s193
        %v426 = vmul.f32 %v425, %v393
        %v427 = vmul.f32 %v425, %v394
        %v428 = vmul.f32 %v425, %v395
        %v429 = vmul.f32 %v425, %v396
        %v430 = vmul.f32 %v425, %v397
        %v431 = vmul.f32 %v425, %v398
        %v432 = vmul.f32 %v425, %v399
        %v433 = vmul.f32 %v425, %v400
        %v434 = vmul.f32 %v425, %v401
        %v435 = vmul.f32 %v425, %v402
        %v436 = vmul.f32 %v425, %v403
        %v437 = vmul.f32 %v425, %v404
        %v438 = vmul.f32 %v425, %v405
        %v439 = vmul.f32 %v425, %v406
        %v440 = vmul.f32 %v425, %v407
        %v441 = vmul.f32 %v425, %v408
        %v442 = vmul.f32 %v425, %v409
        %v443 = vmul.f32 %v425, %v410
        %v444 = vmul.f32 %v425, %v411
        %v445 = vmul.f32 %v425, %v412
        %v446 = vmul.f32 %v425, %v413
        %v447 = vmul.f32 %v425, %v414
        %v448 = vmul.f32 %v425, %v415
        %v449 = vmul.f32 %v425, %v416
        %v450 = vmul.f32 %v425, %v417
        %v451 = vmul.f32 %v425, %v418
        %v452 = vmul.f32 %v425, %v419
        %v453 = vmul.f32 %v425, %v420
        %v454 = vmul.f32 %v425, %v421
        %v455 = vmul.f32 %v425, %v422
        %v456 = vmul.f32 %v425, %v423
        %v457 = vmul.f32 %v425, %v424
        %v458 = vmul.f32 %v426, %v393
        %v459 = vmul.f32 %v427, %v394
        %v460 = vmul.f32 %v428, %v395
        %v461 = vmul.f32 %v429, %v396
        %v462 = vmul.f32 %v430, %v397
        %v463 = vmul.f32 %v431, %v398
        %v464 = vmul.f32 %v432, %v399
        %v465 = vmul.f32 %v433, %v400
        %v466 = vmul.f32 %v434, %v401
        %v467 = vmul.f32 %v435, %v402
        %v468 = vmul.f32 %v436, %v403
        %v469 = vmul.f32 %v437, %v404
        %v470 = vmul.f32 %v438, %v405
        %v471 = vmul.f32 %v439, %v406
        %v472 = vmul.f32 %v440, %v407
        %v473 = vmul.f32 %v441, %v408
        %v474 = vmul.f32 %v442, %v409
        %v475 = vmul.f32 %v443, %v410
        %v476 = vmul.f32 %v444, %v411
        %v477 = vmul.f32 %v445, %v412
        %v478 = vmul.f32 %v446, %v413
        %v479 = vmul.f32 %v447, %v414
        %v480 = vmul.f32 %v448, %v415
        %v481 = vmul.f32 %v449, %v416
        %v482 = vmul.f32 %v450, %v417
        %v483 = vmul.f32 %v451, %v418
        %v484 = vmul.f32 %v452, %v419
        %v485 = vmul.f32 %v453, %v420
        %v486 = vmul.f32 %v454, %v421
        %v487 = vmul.f32 %v455, %v422
        %v488 = vmul.f32 %v456, %v423
        %v489 = vmul.f32 %v457, %v424
        %v490 = vmul.f32 %v458, 1.442695
        %v491 = vpow.pop %v490
        %v492 = vmul.f32 %v459, 1.442695
        %v493 = vpow.pop %v492
        %v494 = vmul.f32 %v460, 1.442695
        %v495 = vpow.pop %v494
        %v496 = vmul.f32 %v461, 1.442695
        %v497 = vpow.pop %v496
        %v498 = vmul.f32 %v462, 1.442695
        %v499 = vpow.pop %v498
        %v500 = vmul.f32 %v463, 1.442695
        %v501 = vpow.pop %v500
        %v502 = vmul.f32 %v464, 1.442695
        %v503 = vpow.pop %v502
        %v504 = vmul.f32 %v465, 1.442695
        %v505 = vpow.pop %v504
        %v506 = vmul.f32 %v466, 1.442695
        %v507 = vpow.pop %v506
        %v508 = vmul.f32 %v467, 1.442695
        %v509 = vpow.pop %v508
        %v510 = vmul.f32 %v468, 1.442695
        %v511 = vpow.pop %v510
        %v512 = vmul.f32 %v469, 1.442695
        %v513 = vpow.pop %v512
        %v514 = vmul.f32 %v470, 1.442695
        %v515 = vpow.pop %v514
        %v516 = vmul.f32 %v471, 1.442695
        %v517 = vpow.pop %v516
        %v518 = vmul.f32 %v472, 1.442695
        %v519 = vpow.pop %v518
        %v520 = vmul.f32 %v473, 1.442695
        %v521 = vpow.pop %v520
        %v522 = vmul.f32 %v474, 1.442695
        %v523 = vpow.pop %v522
        %v524 = vmul.f32 %v475, 1.442695
        %v525 = vpow.pop %v524
        %v526 = vmul.f32 %v476, 1.442695
        %v527 = vpow.pop %v526
        %v528 = vmul.f32 %v477, 1.442695
        %v529 = vpow.pop %v528
        %v530 = vmul.f32 %v478, 1.442695
        %v531 = vpow.pop %v530
        %v532 = vmul.f32 %v479, 1.442695
        %v533 = vpow.pop %v532
        %v534 = vmul.f32 %v480, 1.442695
        %v535 = vpow.pop %v534
        %v536 = vmul.f32 %v481, 1.442695
        %v537 = vpow.pop %v536
        %v538 = vmul.f32 %v482, 1.442695
        %v539 = vpow.pop %v538
        %v540 = vmul.f32 %v483, 1.442695
        %v541 = vpow.pop %v540
        %v542 = vmul.f32 %v484, 1.442695
        %v543 = vpow.pop %v542
        %v544 = vmul.f32 %v485, 1.442695
        %v545 = vpow.pop %v544
        %v546 = vmul.f32 %v486, 1.442695
        %v547 = vpow.pop %v546
        %v548 = vmul.f32 %v487, 1.442695
        %v549 = vpow.pop %v548
        %v550 = vmul.f32 %v488, 1.442695
        %v551 = vpow.pop %v550
        %v552 = vmul.f32 %v489, 1.442695
        %v553 = vpow.pop %v552
        %vm554 = vcmask 408576
        %555 = vst.msk [vmem:[%s173] sm:$0xff] %vm554, %v491
        %556 = vst.msk [vmem:[%s173 + $0x8] sm:$0xff] %vm554, %v493
        %557 = vst.msk [vmem:[%s173 + $0x10] sm:$0xff] %vm554, %v495
        %558 = vst.msk [vmem:[%s173 + $0x18] sm:$0xff] %vm554, %v497
        %559 = vst.msk [vmem:[%s173 + $0x20] sm:$0xff] %vm554, %v499
        %560 = vst.msk [vmem:[%s173 + $0x28] sm:$0xff] %vm554, %v501
        %561 = vst.msk [vmem:[%s173 + $0x30] sm:$0xff] %vm554, %v503
        %562 = vst.msk [vmem:[%s173 + $0x38] sm:$0xff] %vm554, %v505
        %563 = vst.msk [vmem:[%s173 + $0x40] sm:$0xff] %vm554, %v507
        %564 = vst.msk [vmem:[%s173 + $0x48] sm:$0xff] %vm554, %v509
        %565 = vst.msk [vmem:[%s173 + $0x50] sm:$0xff] %vm554, %v511
        %566 = vst.msk [vmem:[%s173 + $0x58] sm:$0xff] %vm554, %v513
        %567 = vst.msk [vmem:[%s173 + $0x60] sm:$0xff] %vm554, %v515
        %568 = vst.msk [vmem:[%s173 + $0x68] sm:$0xff] %vm554, %v517
        %569 = vst.msk [vmem:[%s173 + $0x70] sm:$0xff] %vm554, %v519
        %570 = vst.msk [vmem:[%s173 + $0x78] sm:$0xff] %vm554, %v521
        %571 = vst.msk [vmem:[%s173 + $0x80] sm:$0xff] %vm554, %v523
        %572 = vst.msk [vmem:[%s173 + $0x88] sm:$0xff] %vm554, %v525
        %573 = vst.msk [vmem:[%s173 + $0x90] sm:$0xff] %vm554, %v527
        %574 = vst.msk [vmem:[%s173 + $0x98] sm:$0xff] %vm554, %v529
        %575 = vst.msk [vmem:[%s173 + $0xa0] sm:$0xff] %vm554, %v531
        %576 = vst.msk [vmem:[%s173 + $0xa8] sm:$0xff] %vm554, %v533
        %577 = vst.msk [vmem:[%s173 + $0xb0] sm:$0xff] %vm554, %v535
        %578 = vst.msk [vmem:[%s173 + $0xb8] sm:$0xff] %vm554, %v537
        %579 = vst.msk [vmem:[%s173 + $0xc0] sm:$0xff] %vm554, %v539
        %580 = vst.msk [vmem:[%s173 + $0xc8] sm:$0xff] %vm554, %v541
        %581 = vst.msk [vmem:[%s173 + $0xd0] sm:$0xff] %vm554, %v543
        %582 = vst.msk [vmem:[%s173 + $0xd8] sm:$0xff] %vm554, %v545
        %583 = vst.msk [vmem:[%s173 + $0xe0] sm:$0xff] %vm554, %v547
        %584 = vst.msk [vmem:[%s173 + $0xe8] sm:$0xff] %vm554, %v549
        %585 = vst.msk [vmem:[%s173 + $0xf0] sm:$0xff] %vm554, %v551
        %586 = vst.msk [vmem:[%s173 + $0xf8] sm:$0xff] %vm554, %v553
        %s587 = sand.u32 %s91, 1
        %s588 = sand.u32 %s91, 1
        %s589 = smul.addr %s588, 256
        %s590 = scalar_lea.vmem [#allocation3], %s589
        // Predicated region
        $region33: #{gaussian_smearing.1} parent=31 // pred_check
          %p591 = pneg %p101
        $region34: #{gaussian_smearing.1} parent=31 // pred_check_branch
          %593 = sbr.rel (%p591) target = $region36
        $region35: #{gaussian_smearing.1} parent=31 // pred_region
          %s594 = smul.u32 32, %s15
          %s595 = ssub.s32 63, %s594
          %p596 = scmp.lt.s32.totalorder %s595, 32
          %s597 = scalar_select %p596, %s595, 32
          %s598 = smul.u32 128, %s597
          %p599 = scmp.ne.s32.totalorder 0, %s598
          %s600 = smul.addr %s594, 8
          %s601 = scalar_lea.vmem %s3, %s600
          // Predicated region
          $region37: #{gaussian_smearing.1} parent=35 // pred_check
            %p602 = pneg %p599
          $region38: #{gaussian_smearing.1} parent=35 // pred_check_branch
            %604 = sbr.rel (%p602) target = $region40
          $region39: #{gaussian_smearing.1} parent=35 // pred_region
            // Predicated region
            $region41: #{gaussian_smearing.1} parent=39 // pred_check
              _
            $region42: #{gaussian_smearing.1} parent=39 // pred_check_branch
              %606 = sbr.rel (0) target = $region44
            $region43: #{gaussian_smearing.1} parent=39 // pred_region
              // Predicated region
              $region63: #{gaussian_smearing.1} parent=43 // pred_check
                _
              $region64: #{gaussian_smearing.1} parent=43 // pred_check_branch
                %718 = sbr.rel (0) target = $region66
              $region65: #{gaussian_smearing.1} parent=43 // pred_region
                %s719 = sshrl.u32 %s597, 5
                // While loop
                $region67: #{gaussian_smearing.1} parent=65 // loop_pre_header
                  _
                $region68: #{gaussian_smearing.1} parent=65 // loop_header
                  %s721 = sphi 0, %s723
                  %p722 = scmp.ge.s32.totalorder %s721, %s719
                  %s726 = sphi 0, %s795
                  %s727 = sphi %s590, %s798
                  %s728 = sphi %s601, %s799
                $region69: #{gaussian_smearing.1} parent=65 // loop_header_branch
                  %725 = sbr.rel (%p722) target = $region73
                $region70: #{gaussian_smearing.1} parent=65 // loop_body
                  %v729 = vld [vmem:[%s727] sm:$0xff]
                  %730 = vst [vmem:[%s728] sm:$0xff] %v729
                  %v731 = vld [vmem:[%s727 + $0x8] sm:$0xff]
                  %732 = vst [vmem:[%s728 + $0x8] sm:$0xff] %v731
                  %v733 = vld [vmem:[%s727 + $0x10] sm:$0xff]
                  %734 = vst [vmem:[%s728 + $0x10] sm:$0xff] %v733
                  %v735 = vld [vmem:[%s727 + $0x18] sm:$0xff]
                  %736 = vst [vmem:[%s728 + $0x18] sm:$0xff] %v735
                  %v737 = vld [vmem:[%s727 + $0x20] sm:$0xff]
                  %738 = vst [vmem:[%s728 + $0x20] sm:$0xff] %v737
                  %v739 = vld [vmem:[%s727 + $0x28] sm:$0xff]
                  %740 = vst [vmem:[%s728 + $0x28] sm:$0xff] %v739
                  %v741 = vld [vmem:[%s727 + $0x30] sm:$0xff]
                  %742 = vst [vmem:[%s728 + $0x30] sm:$0xff] %v741
                  %v743 = vld [vmem:[%s727 + $0x38] sm:$0xff]
                  %744 = vst [vmem:[%s728 + $0x38] sm:$0xff] %v743
                  %v745 = vld [vmem:[%s727 + $0x40] sm:$0xff]
                  %746 = vst [vmem:[%s728 + $0x40] sm:$0xff] %v745
                  %v747 = vld [vmem:[%s727 + $0x48] sm:$0xff]
                  %748 = vst [vmem:[%s728 + $0x48] sm:$0xff] %v747
                  %v749 = vld [vmem:[%s727 + $0x50] sm:$0xff]
                  %750 = vst [vmem:[%s728 + $0x50] sm:$0xff] %v749
                  %v751 = vld [vmem:[%s727 + $0x58] sm:$0xff]
                  %752 = vst [vmem:[%s728 + $0x58] sm:$0xff] %v751
                  %v753 = vld [vmem:[%s727 + $0x60] sm:$0xff]
                  %754 = vst [vmem:[%s728 + $0x60] sm:$0xff] %v753
                  %v755 = vld [vmem:[%s727 + $0x68] sm:$0xff]
                  %756 = vst [vmem:[%s728 + $0x68] sm:$0xff] %v755
                  %v757 = vld [vmem:[%s727 + $0x70] sm:$0xff]
                  %758 = vst [vmem:[%s728 + $0x70] sm:$0xff] %v757
                  %v759 = vld [vmem:[%s727 + $0x78] sm:$0xff]
                  %760 = vst [vmem:[%s728 + $0x78] sm:$0xff] %v759
                  %v761 = vld [vmem:[%s727 + $0x80] sm:$0xff]
                  %762 = vst [vmem:[%s728 + $0x80] sm:$0xff] %v761
                  %v763 = vld [vmem:[%s727 + $0x88] sm:$0xff]
                  %764 = vst [vmem:[%s728 + $0x88] sm:$0xff] %v763
                  %v765 = vld [vmem:[%s727 + $0x90] sm:$0xff]
                  %766 = vst [vmem:[%s728 + $0x90] sm:$0xff] %v765
                  %v767 = vld [vmem:[%s727 + $0x98] sm:$0xff]
                  %768 = vst [vmem:[%s728 + $0x98] sm:$0xff] %v767
                  %v769 = vld [vmem:[%s727 + $0xa0] sm:$0xff]
                  %770 = vst [vmem:[%s728 + $0xa0] sm:$0xff] %v769
                  %v771 = vld [vmem:[%s727 + $0xa8] sm:$0xff]
                  %772 = vst [vmem:[%s728 + $0xa8] sm:$0xff] %v771
                  %v773 = vld [vmem:[%s727 + $0xb0] sm:$0xff]
                  %774 = vst [vmem:[%s728 + $0xb0] sm:$0xff] %v773
                  %v775 = vld [vmem:[%s727 + $0xb8] sm:$0xff]
                  %776 = vst [vmem:[%s728 + $0xb8] sm:$0xff] %v775
                  %v777 = vld [vmem:[%s727 + $0xc0] sm:$0xff]
                  %778 = vst [vmem:[%s728 + $0xc0] sm:$0xff] %v777
                  %v779 = vld [vmem:[%s727 + $0xc8] sm:$0xff]
                  %780 = vst [vmem:[%s728 + $0xc8] sm:$0xff] %v779
                  %v781 = vld [vmem:[%s727 + $0xd0] sm:$0xff]
                  %782 = vst [vmem:[%s728 + $0xd0] sm:$0xff] %v781
                  %v783 = vld [vmem:[%s727 + $0xd8] sm:$0xff]
                  %784 = vst [vmem:[%s728 + $0xd8] sm:$0xff] %v783
                  %v785 = vld [vmem:[%s727 + $0xe0] sm:$0xff]
                  %786 = vst [vmem:[%s728 + $0xe0] sm:$0xff] %v785
                  %v787 = vld [vmem:[%s727 + $0xe8] sm:$0xff]
                  %788 = vst [vmem:[%s728 + $0xe8] sm:$0xff] %v787
                  %v789 = vld [vmem:[%s727 + $0xf0] sm:$0xff]
                  %790 = vst [vmem:[%s728 + $0xf0] sm:$0xff] %v789
                  %v791 = vld [vmem:[%s727 + $0xf8] sm:$0xff]
                  %792 = vst [vmem:[%s728 + $0xf8] sm:$0xff] %v791
                  %s793 = sadd.s32 1, %s726
                  %p794 = scmp.ge.s32.totalorder %s793, %s719
                  %s795 = scalar_select %p794, 0, %s793
                  %s796 = smul.u32 %s795, 256
                  %s797 = smul.u32 %s795, 256
                  %s798 = scalar_lea.vmem %s590, %s796 [#allocation3]
                  %s799 = scalar_lea.vmem %s601, %s797
                $region71: #{gaussian_smearing.1} parent=65 // loop_footer
                  %s723 = sadd.s32 %s721, 1
                $region72: #{gaussian_smearing.1} parent=65 // loop_footer_branch
                  %720 = sbr.rel target = $region68
                $region73: #{gaussian_smearing.1} parent=65 // loop_exit
                  _
                %s800 = sshrl.u32 %s597, 5
                %s801 = sand.u32 %s597, 31
                %s802 = smul.u32 %s800, 32
                %s803 = smul.u32 8, %s802
                %s804 = scalar_lea.vmem %s590, %s803 [#allocation3]
                %s805 = smul.u32 8, %s802
                %s806 = scalar_lea.vmem %s601, %s805
                // While loop
                $region74: #{gaussian_smearing.1} parent=65 // loop_pre_header
                  _
                $region75: #{gaussian_smearing.1} parent=65 // loop_header
                  %s808 = sphi 0, %s810
                  %p809 = scmp.ge.s32.totalorder %s808, %s801
                  %s813 = sphi 0, %s820
                  %s814 = sphi %s804, %s823
                  %s815 = sphi %s806, %s824
                $region76: #{gaussian_smearing.1} parent=65 // loop_header_branch
                  %812 = sbr.rel (%p809) target = $region80
                $region77: #{gaussian_smearing.1} parent=65 // loop_body
                  %v816 = vld [vmem:[%s814] sm:$0xff]
                  %817 = vst [vmem:[%s815] sm:$0xff] %v816
                  %s818 = sadd.s32 1, %s813
                  %p819 = scmp.ge.s32.totalorder %s818, %s801
                  %s820 = scalar_select %p819, 0, %s818
                  %s821 = smul.u32 %s820, 8
                  %s822 = smul.u32 %s820, 8
                  %s823 = scalar_lea.vmem %s804, %s821 [#allocation3]
                  %s824 = scalar_lea.vmem %s806, %s822
                $region78: #{gaussian_smearing.1} parent=65 // loop_footer
                  %s810 = sadd.s32 %s808, 1
                $region79: #{gaussian_smearing.1} parent=65 // loop_footer_branch
                  %807 = sbr.rel target = $region75
                $region80: #{gaussian_smearing.1} parent=65 // loop_exit
                  _
              $region66: #{gaussian_smearing.1} parent=43 // pred_fallthru
                _
              // Predicated region
              $region81: #{gaussian_smearing.1} parent=43 // pred_check
                _
              $region82: #{gaussian_smearing.1} parent=43 // pred_check_branch
                %826 = sbr.rel target = $region84
              $region83: #{gaussian_smearing.1} parent=43 // pred_region
                _
              $region84: #{gaussian_smearing.1} parent=43 // pred_fallthru
                _
            $region44: #{gaussian_smearing.1} parent=39 // pred_fallthru
              _
            // Predicated region
            $region45: #{gaussian_smearing.1} parent=39 // pred_check
              _
            $region46: #{gaussian_smearing.1} parent=39 // pred_check_branch
              %608 = sbr.rel target = $region48
            $region47: #{gaussian_smearing.1} parent=39 // pred_region
              %s610 = ssub.s32 256, 1
              %s611 = sshrl.u32 %s597, 5
              // While loop
              $region49: #{gaussian_smearing.1} parent=47 // loop_pre_header
                _
              $region50: #{gaussian_smearing.1} parent=47 // loop_header
                %s613 = sphi 0, %s615
                %p614 = scmp.ge.s32.totalorder %s613, %s611
                %s618 = sphi 0, %s687
                %s619 = sphi %s590, %s690
                %s620 = sphi %s601, %s691
              $region51: #{gaussian_smearing.1} parent=47 // loop_header_branch
                %617 = sbr.rel (%p614) target = $region55
              $region52: #{gaussian_smearing.1} parent=47 // loop_body
                %v621 = vld [vmem:[%s619] sm:%s610]
                %622 = vst [vmem:[%s620] sm:%s610] %v621
                %v623 = vld [vmem:[%s619 + $0x8] sm:%s610]
                %624 = vst [vmem:[%s620 + $0x8] sm:%s610] %v623
                %v625 = vld [vmem:[%s619 + $0x10] sm:%s610]
                %626 = vst [vmem:[%s620 + $0x10] sm:%s610] %v625
                %v627 = vld [vmem:[%s619 + $0x18] sm:%s610]
                %628 = vst [vmem:[%s620 + $0x18] sm:%s610] %v627
                %v629 = vld [vmem:[%s619 + $0x20] sm:%s610]
                %630 = vst [vmem:[%s620 + $0x20] sm:%s610] %v629
                %v631 = vld [vmem:[%s619 + $0x28] sm:%s610]
                %632 = vst [vmem:[%s620 + $0x28] sm:%s610] %v631
                %v633 = vld [vmem:[%s619 + $0x30] sm:%s610]
                %634 = vst [vmem:[%s620 + $0x30] sm:%s610] %v633
                %v635 = vld [vmem:[%s619 + $0x38] sm:%s610]
                %636 = vst [vmem:[%s620 + $0x38] sm:%s610] %v635
                %v637 = vld [vmem:[%s619 + $0x40] sm:%s610]
                %638 = vst [vmem:[%s620 + $0x40] sm:%s610] %v637
                %v639 = vld [vmem:[%s619 + $0x48] sm:%s610]
                %640 = vst [vmem:[%s620 + $0x48] sm:%s610] %v639
                %v641 = vld [vmem:[%s619 + $0x50] sm:%s610]
                %642 = vst [vmem:[%s620 + $0x50] sm:%s610] %v641
                %v643 = vld [vmem:[%s619 + $0x58] sm:%s610]
                %644 = vst [vmem:[%s620 + $0x58] sm:%s610] %v643
                %v645 = vld [vmem:[%s619 + $0x60] sm:%s610]
                %646 = vst [vmem:[%s620 + $0x60] sm:%s610] %v645
                %v647 = vld [vmem:[%s619 + $0x68] sm:%s610]
                %648 = vst [vmem:[%s620 + $0x68] sm:%s610] %v647
                %v649 = vld [vmem:[%s619 + $0x70] sm:%s610]
                %650 = vst [vmem:[%s620 + $0x70] sm:%s610] %v649
                %v651 = vld [vmem:[%s619 + $0x78] sm:%s610]
                %652 = vst [vmem:[%s620 + $0x78] sm:%s610] %v651
                %v653 = vld [vmem:[%s619 + $0x80] sm:%s610]
                %654 = vst [vmem:[%s620 + $0x80] sm:%s610] %v653
                %v655 = vld [vmem:[%s619 + $0x88] sm:%s610]
                %656 = vst [vmem:[%s620 + $0x88] sm:%s610] %v655
                %v657 = vld [vmem:[%s619 + $0x90] sm:%s610]
                %658 = vst [vmem:[%s620 + $0x90] sm:%s610] %v657
                %v659 = vld [vmem:[%s619 + $0x98] sm:%s610]
                %660 = vst [vmem:[%s620 + $0x98] sm:%s610] %v659
                %v661 = vld [vmem:[%s619 + $0xa0] sm:%s610]
                %662 = vst [vmem:[%s620 + $0xa0] sm:%s610] %v661
                %v663 = vld [vmem:[%s619 + $0xa8] sm:%s610]
                %664 = vst [vmem:[%s620 + $0xa8] sm:%s610] %v663
                %v665 = vld [vmem:[%s619 + $0xb0] sm:%s610]
                %666 = vst [vmem:[%s620 + $0xb0] sm:%s610] %v665
                %v667 = vld [vmem:[%s619 + $0xb8] sm:%s610]
                %668 = vst [vmem:[%s620 + $0xb8] sm:%s610] %v667
                %v669 = vld [vmem:[%s619 + $0xc0] sm:%s610]
                %670 = vst [vmem:[%s620 + $0xc0] sm:%s610] %v669
                %v671 = vld [vmem:[%s619 + $0xc8] sm:%s610]
                %672 = vst [vmem:[%s620 + $0xc8] sm:%s610] %v671
                %v673 = vld [vmem:[%s619 + $0xd0] sm:%s610]
                %674 = vst [vmem:[%s620 + $0xd0] sm:%s610] %v673
                %v675 = vld [vmem:[%s619 + $0xd8] sm:%s610]
                %676 = vst [vmem:[%s620 + $0xd8] sm:%s610] %v675
                %v677 = vld [vmem:[%s619 + $0xe0] sm:%s610]
                %678 = vst [vmem:[%s620 + $0xe0] sm:%s610] %v677
                %v679 = vld [vmem:[%s619 + $0xe8] sm:%s610]
                %680 = vst [vmem:[%s620 + $0xe8] sm:%s610] %v679
                %v681 = vld [vmem:[%s619 + $0xf0] sm:%s610]
                %682 = vst [vmem:[%s620 + $0xf0] sm:%s610] %v681
                %v683 = vld [vmem:[%s619 + $0xf8] sm:%s610]
                %684 = vst [vmem:[%s620 + $0xf8] sm:%s610] %v683
                %s685 = sadd.s32 1, %s618
                %p686 = scmp.ge.s32.totalorder %s685, %s611
                %s687 = scalar_select %p686, 0, %s685
                %s688 = smul.u32 %s687, 256
                %s689 = smul.u32 %s687, 256
                %s690 = scalar_lea.vmem %s590, %s688 [#allocation3]
                %s691 = scalar_lea.vmem %s601, %s689
              $region53: #{gaussian_smearing.1} parent=47 // loop_footer
                %s615 = sadd.s32 %s613, 1
              $region54: #{gaussian_smearing.1} parent=47 // loop_footer_branch
                %612 = sbr.rel target = $region50
              $region55: #{gaussian_smearing.1} parent=47 // loop_exit
                _
              %s692 = sshrl.u32 %s597, 5
              %s693 = sand.u32 %s597, 31
              %s694 = smul.u32 %s692, 32
              %s695 = smul.u32 8, %s694
              %s696 = scalar_lea.vmem %s590, %s695 [#allocation3]
              %s697 = smul.u32 8, %s694
              %s698 = scalar_lea.vmem %s601, %s697
              // While loop
              $region56: #{gaussian_smearing.1} parent=47 // loop_pre_header
                _
              $region57: #{gaussian_smearing.1} parent=47 // loop_header
                %s700 = sphi 0, %s702
                %p701 = scmp.ge.s32.totalorder %s700, %s693
                %s705 = sphi 0, %s712
                %s706 = sphi %s696, %s715
                %s707 = sphi %s698, %s716
              $region58: #{gaussian_smearing.1} parent=47 // loop_header_branch
                %704 = sbr.rel (%p701) target = $region62
              $region59: #{gaussian_smearing.1} parent=47 // loop_body
                %v708 = vld [vmem:[%s706] sm:%s610]
                %709 = vst [vmem:[%s707] sm:%s610] %v708
                %s710 = sadd.s32 1, %s705
                %p711 = scmp.ge.s32.totalorder %s710, %s693
                %s712 = scalar_select %p711, 0, %s710
                %s713 = smul.u32 %s712, 8
                %s714 = smul.u32 %s712, 8
                %s715 = scalar_lea.vmem %s696, %s713 [#allocation3]
                %s716 = scalar_lea.vmem %s698, %s714
              $region60: #{gaussian_smearing.1} parent=47 // loop_footer
                %s702 = sadd.s32 %s700, 1
              $region61: #{gaussian_smearing.1} parent=47 // loop_footer_branch
                %699 = sbr.rel target = $region57
              $region62: #{gaussian_smearing.1} parent=47 // loop_exit
                _
            $region48: #{gaussian_smearing.1} parent=39 // pred_fallthru
              _
          $region40: #{gaussian_smearing.1} parent=35 // pred_fallthru
            _
          %827 = vnop
        $region36: #{gaussian_smearing.1} parent=31 // pred_fallthru
          _
      $region32: #{gaussian_smearing.1} parent=5 // pred_fallthru
        _
      %p828 = scmp.le.s32.totalorder 2, %s10
      // Predicated region
      $region85: #{gaussian_smearing.1} parent=5 // pred_check
        %p829 = pneg %p828
      $region86: #{gaussian_smearing.1} parent=5 // pred_check_branch
        %831 = sbr.rel (%p829) target = $region88
      $region87: #{gaussian_smearing.1} parent=5 // pred_region
        %s832 = ssub.s32 %s10, 2
        // Predicated region
        $region89: #{gaussian_smearing.1} parent=87 // pred_check
          %p833 = pneg %p107
        $region90: #{gaussian_smearing.1} parent=87 // pred_check_branch
          %835 = sbr.rel (%p833) target = $region92
        $region91: #{gaussian_smearing.1} parent=87 // pred_region
          %s836 = sand.u32 %s92, 1
          %s837 = sand.u32 %s92, 1
          %s838 = smul.addr %s837, 256
          %s839 = scalar_lea.vmem [#allocation3], %s838
        $region92: #{gaussian_smearing.1} parent=87 // pred_fallthru
          _
      $region88: #{gaussian_smearing.1} parent=5 // pred_fallthru
        _
    $region6: #{gaussian_smearing.1} parent=1 // loop_footer
      %s14 = sadd.s32 1, %s10
    $region7: #{gaussian_smearing.1} parent=1 // loop_footer_branch
      %9 = sbr.rel target = $region3
    $region8: #{gaussian_smearing.1} parent=1 // loop_exit
      _

</llo_original>
